<compile_context>
chip_gen: v7x
topology: tpu7x:2x2x1
jax: 0.10.0
libtpu: 0.0.40
codegen_flags: <defaults>
</compile_context>

<pallas_src>
import functools

import numpy as np
import jax
import jax.numpy as jnp
from jax.experimental import pallas as pl
from jax.experimental.pallas import tpu as pltpu


# ---------------------------------------------------------------------------
# Pallas kernel: one (tm x K) @ (K x tn) bf16 matmul per grid step, f32
# accumulation on the MXU, bias fused, f32 output tile.
# ---------------------------------------------------------------------------

def _fused_conv_kernel(a_ref, w_ref, bias_ref, o_ref):
    acc = jnp.dot(a_ref[...], w_ref[...], preferred_element_type=jnp.float32)
    o_ref[...] = acc + bias_ref[...]          # (tm,tn) + (1,tn) broadcast, f32


def fused_patch_matmul(patches, w_eff, bias_eff):
    """(M,K) bf16 @ (K,N) bf16 + bias, f32 out.  Full-K blocks (no K loop)."""
    M, K = patches.shape
    K2, N = w_eff.shape
    assert K == K2 and bias_eff.shape == (1, N)

    tm = 256 if M >= 256 else M               # full-dim block if M is small
    if N >= 256:
        tn = 256
    elif N >= 128:
        tn = 128
    else:
        tn = N                                # full-dim block if N is small

    grid = (pl.cdiv(M, tm), pl.cdiv(N, tn))

    # VMEM budget: double-buffered A/B/bias tiles + f32 output tile.
    vmem_need = 2 * (tm * K * 2 + K * tn * 2 + tn * 4 + tm * tn * 4)
    vmem_limit = int(min(max(2 * vmem_need, 16 * 1024 * 1024), 48 * 1024 * 1024))

    return pl.pallas_call(
        _fused_conv_kernel,
        out_shape=jax.ShapeDtypeStruct((M, N), jnp.float32),
        grid_spec=pltpu.PrefetchScalarGridSpec(
            num_scalar_prefetch=0,
            grid=grid,
            in_specs=[
                pl.BlockSpec((tm, K), lambda i, j: (i, 0)),   # patches tile
                pl.BlockSpec((K, tn), lambda i, j: (0, j)),   # weight tile
                pl.BlockSpec((1, tn), lambda i, j: (0, j)),   # fused bias
            ],
            out_specs=pl.BlockSpec((tm, tn), lambda i, j: (i, j)),
        ),
        compiler_params=pltpu.CompilerParams(
            dimension_semantics=("parallel", "parallel"),
            vmem_limit_bytes=vmem_limit),
    )(patches, w_eff, bias_eff)


# ---------------------------------------------------------------------------
# Trace-time weight transform: fold nearest-upsample(s) into the conv weights.
#
# y[b, iy*s+py, ix*s+px] = sum_{dy,dx} W_eff[py,px,dy,dx] . x_pad[iy+dy, ix+dx]
# where W_eff[py,px,dy,dx] = sum_{di: floor((py+di-1)/s)==dy-1}
#                            sum_{dj: floor((px+dj-1)/s)==dx-1}  w[di,dj]
# ---------------------------------------------------------------------------

def _phase_mixing_matrix(k, s):
    m = np.zeros((k, s, k), np.float32)
    for d in range(k):
        for p in range(s):
            off = (p + d - 1) // s            # floor div; "-1" from padding=1
            m[d, p, off + 1] = 1.0
    return m


def _effective_weights(weight, bias, s):
    # weight: (Cout, Cin, kh, kw) PyTorch layout (f32); bias: (Cout,)
    cout, cin, kh, kw = weight.shape
    mh = jnp.asarray(_phase_mixing_matrix(kh, s))      # (kh, s, kh)
    mw = jnp.asarray(_phase_mixing_matrix(kw, s))      # (kw, s, kw)
    # -> (dy, dx, ci, py, px, co)
    w_eff = jnp.einsum('oiab,apy,bqx->yxipqo',
                       weight.astype(jnp.float32), mh, mw)
    w_eff = w_eff.reshape(kh * kw * cin, s * s * cout).astype(jnp.bfloat16)
    bias_eff = jnp.tile(bias.astype(jnp.float32), s * s).reshape(1, s * s * cout)
    return w_eff, bias_eff


def _extract_patches(x_nhwc, kh, kw):
    """3x3 patches of the (small) non-upsampled input, bf16, no upsampled temp."""
    B, H, W, C = x_nhwc.shape
    xp = jnp.pad(x_nhwc, ((0, 0), (1, 1), (1, 1), (0, 0)))
    taps = [xp[:, dy:dy + H, dx:dx + W, :]
            for dy in range(kh) for dx in range(kw)]
    return jnp.concatenate(taps, axis=-1).reshape(B * H * W, kh * kw * C)


# ---------------------------------------------------------------------------
# ResizeConv2d forward (NCHW in / NCHW out, matching the PyTorch module)
# ---------------------------------------------------------------------------

def resize_conv2d(x_nchw, weight, bias, scale_factor):
    s = int(scale_factor)
    cout, cin, kh, kw = weight.shape
    assert kh == 3 and kw == 3, "module uses padding=1 (same-conv for k=3)"
    B, C, H, W = x_nchw.shape
    assert C == cin

    x_nhwc = jnp.transpose(x_nchw, (0, 2, 3, 1)).astype(jnp.bfloat16)
    patches = _extract_patches(x_nhwc, kh, kw)            # (B*H*W, 9*Cin) bf16
    w_eff, bias_eff = _effective_weights(weight, bias, s)  # (9*Cin, s*s*Cout)

    out2d = fused_patch_matmul(patches, w_eff, bias_eff)   # (B*H*W, s*s*Cout) f32

    # pixel shuffle: (b, iy, ix, py, px, co) -> (b, co, iy*s+py, ix*s+px)
    out = out2d.reshape(B, H, W, s, s, cout)
    out = out.transpose(0, 1, 3, 2, 4, 5).reshape(B, H * s, W * s, cout)
    return out.transpose(0, 3, 1, 2)


# ---------------------------------------------------------------------------
# Independent reference: explicit nearest upsample + 3x3 conv (pad=1), f32.
# Uses the same bf16-rounded activations; weights stay f32.
# ---------------------------------------------------------------------------

def reference_resize_conv(x, weight, bias, s):
    xb = x.astype(jnp.bfloat16).astype(jnp.float32)
    xu = jnp.repeat(jnp.repeat(xb, s, axis=2), s, axis=3)   # NCHW nearest
    xu = jnp.pad(xu, ((0, 0), (0, 0), (1, 1), (1, 1)))
    Hs, Ws = x.shape[2] * s, x.shape[3] * s
    out = jnp.broadcast_to(bias[None, :, None, None],
                           (x.shape[0], weight.shape[0], Hs, Ws)).astype(jnp.float32)
    for di in range(3):
        for dj in range(3):
            out = out + jnp.einsum('bchw,oc->bohw',
                                   xu[:, :, di:di + Hs, dj:dj + Ws],
                                   weight[:, :, di, dj],
                                   precision=jax.lax.Precision.HIGHEST)
    return out


if __name__ == "__main__":
    key = jax.random.PRNGKey(0)
    kx, kw_, kb = jax.random.split(key, 3)

    # Small shapes consistent with the module: B=2, Cin=16, H=W=16,
    # Cout=32, scale_factor=2  (so N = s*s*Cout = 128 -> lane-dense output).
    B, Cin, H, W = 2, 16, 16, 16
    Cout, scale = 32, 2

    x = jax.random.normal(kx, (B, Cin, H, W), jnp.float32)
    fan_in = Cin * 3 * 3
    bound = 1.0 / np.sqrt(fan_in)
    weight = jax.random.uniform(kw_, (Cout, Cin, 3, 3), jnp.float32, -bound, bound)
    bias = jax.random.uniform(kb, (Cout,), jnp.float32, -bound, bound)

    fwd = jax.jit(functools.partial(resize_conv2d, scale_factor=scale))
    out = fwd(x, weight, bias)
    jax.block_until_ready(out)

    assert out.shape == (B, Cout, H * scale, W * scale)
    assert bool(jnp.all(jnp.isfinite(out)))

    ref = reference_resize_conv(x, weight, bias, scale)
    max_err = float(jnp.max(jnp.abs(out - ref)))
    assert max_err < 0.1, f"max abs err {max_err} vs reference"

    print("KERNEL_OK")
</pallas_src>

<mosaic_0001>
module attributes {stable_mosaic.version = 11 : i64} {
  func.func @_fused_conv_kernel(%arg0: i32, %arg1: i32, %arg2: memref<256x144xbf16, #tpu.memory_space<vmem>>, %arg3: memref<144x128xbf16, #tpu.memory_space<vmem>>, %arg4: memref<1x128xf32, #tpu.memory_space<vmem>>, %arg5: memref<256x128xf32, #tpu.memory_space<vmem>>) attributes {dimension_semantics = [#tpu.dimension_semantics<parallel>, #tpu.dimension_semantics<parallel>], iteration_bounds = array<i64: 2, 1>, scalar_prefetch = 0 : i64, scratch_operands = 0 : i64, tpu.core_type = #tpu.core_type<tc>, window_params = [{transform_indices = @transform_0, window_bounds = array<i64: 256, 144>}, {transform_indices = @transform_1, window_bounds = array<i64: 144, 128>}, {transform_indices = @transform_2, window_bounds = array<i64: 1, 128>}, {transform_indices = @transform_3, window_bounds = array<i64: 256, 128>}]} {
    %c0 = arith.constant 0 : index
    %c0_0 = arith.constant 0 : index
    %0 = vector.load %arg2[%c0, %c0_0] : memref<256x144xbf16, #tpu.memory_space<vmem>>, vector<256x144xbf16>
    %c0_1 = arith.constant 0 : index
    %c0_2 = arith.constant 0 : index
    %1 = vector.load %arg3[%c0_1, %c0_2] : memref<144x128xbf16, #tpu.memory_space<vmem>>, vector<144x128xbf16>
    %cst = arith.constant dense<0.000000e+00> : vector<256x128xf32>
    %2 = tpu.matmul %0, %1, %cst {dimension_numbers = #tpu.dot_dimension_numbers<[1], [0], [0], [1], [0, 0, 1, 1], [], []>} : vector<256x144xbf16>, vector<144x128xbf16>, vector<256x128xf32> -> vector<256x128xf32>
    %c0_3 = arith.constant 0 : index
    %c0_4 = arith.constant 0 : index
    %3 = vector.load %arg4[%c0_3, %c0_4] : memref<1x128xf32, #tpu.memory_space<vmem>>, vector<1x128xf32>
    %4 = vector.broadcast %3 : vector<1x128xf32> to vector<256x128xf32>
    %5 = arith.addf %2, %4 : vector<256x128xf32>
    %c0_5 = arith.constant 0 : index
    %c0_6 = arith.constant 0 : index
    %6 = vector.load %arg5[%c0_5, %c0_6] : memref<256x128xf32, #tpu.memory_space<vmem>>, vector<256x128xf32>
    tpu.vector_store %arg5[%c0_5, %c0_6], %5 {strides = array<i32>} : memref<256x128xf32, #tpu.memory_space<vmem>>, vector<256x128xf32>,
    return
  }
  func.func @transform_0(%arg0: i32, %arg1: i32) -> (i32, i32) {
    %c0_i32 = arith.constant 0 : i32
    %c0_i32_0 = arith.constant 0 : i32
    return %arg0, %c0_i32 : i32, i32
  }
  func.func @transform_1(%arg0: i32, %arg1: i32) -> (i32, i32) {
    %c0_i32 = arith.constant 0 : i32
    %c0_i32_0 = arith.constant 0 : i32
    return %c0_i32, %arg1 : i32, i32
  }
  func.func @transform_2(%arg0: i32, %arg1: i32) -> (i32, i32) {
    %c0_i32 = arith.constant 0 : i32
    %c0_i32_0 = arith.constant 0 : i32
    return %c0_i32, %arg1 : i32, i32
  }
  func.func @transform_3(%arg0: i32, %arg1: i32) -> (i32, i32) {
    %c0_i32 = arith.constant 0 : i32
    return %arg0, %arg1 : i32, i32
  }
}

</mosaic_0001>

<llo_original>
// kernel: tile.9
$region0: #{tile.9}
  %s0 = inlined_call_operand.vmem [shape: f32[4,32], index: 0, kind: input, shape index: {}]
  %s1 = inlined_call_operand.vmem [shape: f32[1,128], index: 1, kind: output, shape index: {}]
  $region1: #{tile.9} parent=0
    #allocation0 [shape = 'u8[4096]{0}', space=vmem, size = 0x1000, scoped, tag = 'scoped mem for output reshape']
    #allocation1 [shape = 'u8[4096]{0}', space=vmem, size = 0x1000, scoped, tag = 'scoped mem for input reshape']
    %s3 = sshllo.u32 0, 4
    %v4 = vld [vmem:[%s0] sm:%s3]
    %5 = vst [vmem:[#allocation1] sm:%s3] %v4
    %v6 = vld [vmem:[#allocation1] sm:$0x1]
    %vm7 = vcmask 261120
    %8 = vst.msk [vmem:[#allocation0] sm:$0x1] %vm7, %v6
    %s9 = scalar_lea.vmem [#allocation1], 3
    %v10 = vld [vmem:[%s9] sm:$0x1]
    %11 = vrot.lane.b32.xlu0 %v10, 96
    %v12 = vpop.permute.xlu0 %11
    %vm13 = vcmask 1048320
    %14 = vst.msk [vmem:[#allocation0] sm:$0x1] %vm13, %v12
    %s15 = scalar_lea.vmem [#allocation1], 2
    %v16 = vld [vmem:[%s15] sm:$0x1]
    %17 = vrot.lane.b32.xlu0 %v16, 64
    %v18 = vpop.permute.xlu0 %17
    %vm19 = vcmask 785920
    %20 = vst.msk [vmem:[#allocation0] sm:$0x1] %vm19, %v18
    %s21 = scalar_lea.vmem [#allocation1], 1
    %v22 = vld [vmem:[%s21] sm:$0x1]
    %23 = vrot.lane.b32.xlu0 %v22, 32
    %v24 = vpop.permute.xlu0 %23
    %vm25 = vcmask 523520
    %26 = vst.msk [vmem:[#allocation0] sm:$0x1] %vm25, %v24
    %s28 = sshllo.u32 0, 1
    %v30 = vld [vmem:[#allocation0] sm:%s28]
    %s31 = sshllo.u32 0, 1
    %32 = vst [vmem:[%s1] sm:%s31] %v30

// kernel: tile.8
$region0: #{tile.8}
  #allocation0 [shape = 's32[1]{0}', space=sflag, size = 0x4, scoped, tag = 'scoped memory for tile.8']
  %s0 = inlined_call_operand.vmem [shape: f32[32], index: 0, kind: input, shape index: {}]
  %s1 = inlined_call_operand.vmem [shape: f32[4,32], index: 1, kind: output, shape index: {}]
  // Predicated region
  $region2: #{tile.8} parent=0 // pred_check
    _
  $region3: #{tile.8} parent=0 // pred_check_branch
    %3 = sbr.rel (0) target = $region5
  $region4: #{tile.8} parent=0 // pred_region
    _
  $region5: #{tile.8} parent=0 // pred_fallthru
    _
  %v4 = vld [vmem:[%s0] ss:$0 sm:$0xff]
  %5 = vst [vmem:[%s1] sm:$0xf] %v4

// kernel: resize_conv2d.1
$region0: #{resize_conv2d.1}
  #allocation0 [shape = 'u32[]', space=smem, size = 0x4, offset = 0x4, fixed_abs, tag = 'smem constant byte address 0x4 - core index']
  #allocation1 [shape = 'u32[144,128]{1,0:T(1,128)}', space=vmem, size = 0x12000, scoped, tag = 'internal scratch']
  %s0 = inlined_call_operand.vmem [shape: bf16[512,144], index: 0, kind: input, shape index: {}]
  %s1 = inlined_call_operand.vmem [shape: bf16[144,128], index: 1, kind: input, shape index: {}]
  %s2 = inlined_call_operand.vmem [shape: f32[1,128], index: 2, kind: input, shape index: {}]
  %s3 = inlined_call_operand.vmem [shape: f32[512,128], index: 3, kind: output, shape index: {}]
  %s4 = sld [smem:[#allocation0]]
  $region45: #{resize_conv2d.1} parent=0
    _
  %s6 = ssub.s32 1, %s4
  %s7 = scalar_select 0, %s6, %s4
  loop: start=0, step=1, limit=4
  $region2: #{resize_conv2d.1} parent=0 // loop_pre_header
    _
  $region3: #{resize_conv2d.1} parent=0 // loop_header
    %s9 = sphi 0, %s13
    %p10 = scmp.ge.s32.totalorder %s9, 4
    %s16 = sphi 0, %s28
    %s17 = sphi 0, %s24
    %s18 = sphi 0, %s16
    %s19 = sphi 0, %s17
    %s20 = sphi 0, %s18
    %s21 = sphi 0, %s19
    %s31 = sphi 0, %s33
    %s34 = sphi 0, %s31
    %s35 = sphi 0, %s34
    %s51 = sphi 0, %s35
    %s57 = sphi 0, %s59
    %s60 = sphi 0, %s57
    %s61 = sphi 0, %s60
    %s77 = sphi 0, %s61
    %s83 = sphi 0, %s85
    %s86 = sphi 0, %s83
    %s87 = sphi 0, %s86
    %s103 = sphi 0, %s87
    %s111 = sphi 0, %s113
    %s114 = sphi 0, %s111
    %s115 = sphi 0, %s114
    %s131 = sphi 0, %s115
  $region4: #{resize_conv2d.1} parent=0 // loop_header_branch
    %12 = sbr.rel (%p10) target = $region8
  $region5: #{resize_conv2d.1} parent=0 // loop_body
    %s14 = ssub.s32 %s9, 1
    %s15 = ssub.s32 %s9, 2
    %s22 = sadd.s32 1, %s17
    %p23 = scmp.ge.s32.totalorder %s22, 1
    %s24 = scalar_select %p23, 0, %s22
    %s25 = sadd.s32 1, %s16
    %s26 = scalar_select %p23, %s25, %s16
    %p27 = scmp.ge.s32.totalorder %s26, 2
    %s28 = scalar_select %p27, 0, %s26
    %s29 = ssub.s32 %s16, %s28
    %p30 = scmp.eq.s32.totalorder %s29, 0
    %s32 = sadd.s32 %s31, 1
    %s33 = scalar_select %p30, %s31, %s32
    %p36 = pneg %p30
    %p37 = scmp.eq.s32.totalorder %s9, 1
    %p38 = por %p36, %p37
    %p39 = scmp.ne.s32.totalorder %s31, %s34
    %p40 = scmp.eq.s32.totalorder %s9, 0
    %p41 = por %p39, %p40
    %p42 = scmp.ne.s32.totalorder %s31, %s34
    %p43 = scmp.eq.s32.totalorder %s14, 1
    %p44 = por %p42, %p43
    %p45 = scmp.ne.s32.totalorder %s34, %s35
    %p46 = scmp.eq.s32.totalorder %s14, 0
    %p47 = por %p45, %p46
    %p48 = scmp.ne.s32.totalorder %s34, %s35
    %p49 = scmp.eq.s32.totalorder %s15, 1
    %p50 = por %p48, %p49
    %p52 = scmp.ne.s32.totalorder %s35, %s51
    %p53 = scmp.eq.s32.totalorder %s15, 0
    %p54 = por %p52, %p53
    %s55 = ssub.s32 %s17, %s24
    %p56 = scmp.eq.s32.totalorder %s55, 0
    %s58 = sadd.s32 %s57, 1
    %s59 = scalar_select %p56, %s57, %s58
    %p62 = pneg %p56
    %p63 = scmp.eq.s32.totalorder %s9, 1
    %p64 = por %p62, %p63
    %p65 = scmp.ne.s32.totalorder %s57, %s60
    %p66 = scmp.eq.s32.totalorder %s9, 0
    %p67 = por %p65, %p66
    %p68 = scmp.ne.s32.totalorder %s57, %s60
    %p69 = scmp.eq.s32.totalorder %s14, 1
    %p70 = por %p68, %p69
    %p71 = scmp.ne.s32.totalorder %s60, %s61
    %p72 = scmp.eq.s32.totalorder %s14, 0
    %p73 = por %p71, %p72
    %p74 = scmp.ne.s32.totalorder %s60, %s61
    %p75 = scmp.eq.s32.totalorder %s15, 1
    %p76 = por %p74, %p75
    %p78 = scmp.ne.s32.totalorder %s61, %s77
    %p79 = scmp.eq.s32.totalorder %s15, 0
    %p80 = por %p78, %p79
    %s81 = ssub.s32 %s17, %s24
    %p82 = scmp.eq.s32.totalorder %s81, 0
    %s84 = sadd.s32 %s83, 1
    %s85 = scalar_select %p82, %s83, %s84
    %p88 = pneg %p82
    %p89 = scmp.eq.s32.totalorder %s9, 1
    %p90 = por %p88, %p89
    %p91 = scmp.ne.s32.totalorder %s83, %s86
    %p92 = scmp.eq.s32.totalorder %s9, 0
    %p93 = por %p91, %p92
    %p94 = scmp.ne.s32.totalorder %s83, %s86
    %p95 = scmp.eq.s32.totalorder %s14, 1
    %p96 = por %p94, %p95
    %p97 = scmp.ne.s32.totalorder %s86, %s87
    %p98 = scmp.eq.s32.totalorder %s14, 0
    %p99 = por %p97, %p98
    %p100 = scmp.ne.s32.totalorder %s86, %s87
    %p101 = scmp.eq.s32.totalorder %s15, 1
    %p102 = por %p100, %p101
    %p104 = scmp.ne.s32.totalorder %s87, %s103
    %p105 = scmp.eq.s32.totalorder %s15, 0
    %p106 = por %p104, %p105
    %s107 = ssub.s32 %s16, %s28
    %s108 = ssub.s32 %s17, %s24
    %s109 = sor.u32 %s107, %s108
    %p110 = scmp.eq.s32.totalorder %s109, 0
    %s112 = sadd.s32 %s111, 1
    %s113 = scalar_select %p110, %s111, %s112
    %p116 = pneg %p110
    %p117 = scmp.eq.s32.totalorder %s9, 1
    %p118 = por %p116, %p117
    %p119 = scmp.ne.s32.totalorder %s111, %s114
    %p120 = scmp.eq.s32.totalorder %s9, 0
    %p121 = por %p119, %p120
    %p122 = scmp.ne.s32.totalorder %s111, %s114
    %p123 = scmp.eq.s32.totalorder %s14, 1
    %p124 = por %p122, %p123
    %p125 = scmp.ne.s32.totalorder %s114, %s115
    %p126 = scmp.eq.s32.totalorder %s14, 0
    %p127 = por %p125, %p126
    %p128 = scmp.ne.s32.totalorder %s114, %s115
    %p129 = scmp.eq.s32.totalorder %s15, 1
    %p130 = por %p128, %p129
    %p132 = scmp.ne.s32.totalorder %s115, %s131
    %p133 = scmp.eq.s32.totalorder %s15, 0
    %p134 = por %p132, %p133
    %p135 = scmp.le.s32.totalorder 1, %s9
    %p136 = scmp.lt.s32.totalorder %s9, 3
    %p137 = pnand %p135, %p136
    %p138 = pneg %p137
    // Predicated region
    $region9: #{resize_conv2d.1} parent=5 // pred_check
      _
    $region10: #{resize_conv2d.1} parent=5 // pred_check_branch
      %140 = sbr.rel (%p137) target = $region12
    $region11: #{resize_conv2d.1} parent=5 // pred_region
      %s141 = ssub.s32 %s9, 1
      // Predicated region
      $region13: #{resize_conv2d.1} parent=11 // pred_check
        %p142 = pneg %p73
      $region14: #{resize_conv2d.1} parent=11 // pred_check_branch
        %144 = sbr.rel (%p142) target = $region16
      $region15: #{resize_conv2d.1} parent=11 // pred_region
        %p145 = scmp.lt.s32.totalorder %s19, 0
        %s146 = scalar_select %p145, %s19, 0
        %s147 = smul.addr %s146, 4
        %s148 = scalar_lea.vmem %s1, %s147
      $region16: #{resize_conv2d.1} parent=11 // pred_fallthru
        _
      // Predicated region
      $region17: #{resize_conv2d.1} parent=11 // pred_check
        %p149 = pneg %p99
      $region18: #{resize_conv2d.1} parent=11 // pred_check_branch
        %151 = sbr.rel (%p149) target = $region20
      $region19: #{resize_conv2d.1} parent=11 // pred_region
        %p152 = scmp.lt.s32.totalorder %s19, 0
        %s153 = scalar_select %p152, %s19, 0
        %s154 = scalar_lea.vmem %s2, %s153
      $region20: #{resize_conv2d.1} parent=11 // pred_fallthru
        _
    $region12: #{resize_conv2d.1} parent=5 // pred_fallthru
      _
    %p155 = scmp.lt.s32.totalorder %s9, 2
    // Predicated region
    $region21: #{resize_conv2d.1} parent=5 // pred_check
      %p156 = pneg %p155
    $region22: #{resize_conv2d.1} parent=5 // pred_check_branch
      %158 = sbr.rel (%p156) target = $region24
    $region23: #{resize_conv2d.1} parent=5 // pred_region
      // Predicated region
      $region25: #{resize_conv2d.1} parent=23 // pred_check
        %p159 = pneg %p41
      $region26: #{resize_conv2d.1} parent=23 // pred_check_branch
        %161 = sbr.rel (%p159) target = $region28
      $region27: #{resize_conv2d.1} parent=23 // pred_region
        %s162 = smul.u32 32, %s16
        %p163 = scmp.lt.s32.totalorder %s162, 63
        %s164 = scalar_select %p163, %s162, 63
        %s165 = smul.addr %s164, 2
        %s166 = smul.addr %s165, 4
        %s167 = scalar_lea.vmem %s0, %s166
        %s168 = smul.u32 32, %s16
      $region28: #{resize_conv2d.1} parent=23 // pred_fallthru
        _
    $region24: #{resize_conv2d.1} parent=5 // pred_fallthru
      _
    %p169 = scmp.le.s32.totalorder 1, %s9
    %p170 = scmp.lt.s32.totalorder %s9, 3
    %p171 = pnand %p169, %p170
    %p172 = pneg %p171
    // Predicated region
    $region29: #{resize_conv2d.1} parent=5 // pred_check
      _
    $region30: #{resize_conv2d.1} parent=5 // pred_check_branch
      %174 = sbr.rel (%p171) target = $region32
    $region31: #{resize_conv2d.1} parent=5 // pred_region
      %s175 = ssub.s32 %s9, 1
      %s176 = smul.u32 32, %s18
      %p177 = scmp.lt.s32.totalorder %s176, 63
      %s178 = scalar_select %p177, %s176, 63
      %s179 = smul.addr %s178, 2
      %s180 = smul.addr %s179, 4
      %s181 = scalar_lea.vmem %s0, %s180
      %p182 = pneg %p47
      %p183 = pneg %p44
      %p184 = scmp.lt.s32.totalorder %s19, 0
      %s185 = scalar_select %p184, %s19, 0
      %s186 = smul.addr %s185, 4
      %s187 = scalar_lea.vmem %s1, %s186
      %p188 = pneg %p73
      %p189 = pneg %p70
      %p190 = scmp.lt.s32.totalorder %s19, 0
      %s191 = scalar_select %p190, %s19, 0
      %s192 = scalar_lea.vmem %s2, %s191
      %p193 = pneg %p99
      %p194 = pneg %p96
      %p195 = pneg %p127
      %p196 = pneg %p124
      %s197 = smul.u32 32, %s18
      %p198 = scmp.lt.s32.totalorder %s197, 63
      %s199 = scalar_select %p198, %s197, 63
      %p200 = scmp.lt.s32.totalorder %s19, 0
      %s201 = scalar_select %p200, %s19, 0
      %s202 = sadd.s32 %s201, %s199
      %s203 = smul.addr %s202, 8
      %s204 = scalar_lea.vmem %s3, %s203
      %s205 = smul.u32 32, %s18
      %p206 = scmp.lt.s32.totalorder %s205, 63
      %s207 = scalar_select %p206, %s205, 63
      %s208 = smul.addr %s207, 2
      %s209 = smul.addr %s208, 4
      %s210 = scalar_lea.vmem %s0, %s209
      %s211 = smul.u32 32, %s18
      %p212 = scmp.lt.s32.totalorder %s19, 0
      %s213 = scalar_select %p212, %s19, 0
      %s214 = smul.addr %s213, 4
      %s215 = scalar_lea.vmem %s1, %s214
      %p216 = scmp.lt.s32.totalorder %s19, 0
      %s217 = scalar_select %p216, %s19, 0
      %s218 = scalar_lea.vmem %s2, %s217
      %s219 = smul.u32 32, %s18
      %p220 = scmp.lt.s32.totalorder %s219, 63
      %s221 = scalar_select %p220, %s219, 63
      %p222 = scmp.lt.s32.totalorder %s19, 0
      %s223 = scalar_select %p222, %s19, 0
      %s224 = sadd.s32 %s223, %s221
      %s225 = smul.addr %s224, 8
      %s226 = scalar_lea.vmem %s3, %s225
      %s227 = smul.u32 32, %s18
      %v229 = vld [vmem:[%s210] sm:$0xff]
      %v230 = vld [vmem:[%s210 + $0x8] sm:$0xff]
      %v231 = vld [vmem:[%s210 + $0x10] sm:$0xff]
      %v232 = vld [vmem:[%s210 + $0x18] sm:$0xff]
      %v233 = vld [vmem:[%s210 + $0x20] sm:$0xff]
      %v234 = vld [vmem:[%s210 + $0x28] sm:$0xff]
      %v235 = vld [vmem:[%s210 + $0x30] sm:$0xff]
      %v236 = vld [vmem:[%s210 + $0x38] sm:$0xff]
      %v237 = vld [vmem:[%s210 + $0x40] sm:$0xff]
      %v238 = vld [vmem:[%s210 + $0x48] sm:$0xff]
      %v239 = vld [vmem:[%s210 + $0x50] sm:$0xff]
      %v240 = vld [vmem:[%s210 + $0x58] sm:$0xff]
      %v241 = vld [vmem:[%s210 + $0x60] sm:$0xff]
      %v242 = vld [vmem:[%s210 + $0x68] sm:$0xff]
      %v243 = vld [vmem:[%s210 + $0x70] sm:$0xff]
      %v244 = vld [vmem:[%s210 + $0x78] sm:$0xff]
      %v245 = vld [vmem:[%s210 + $0x80] sm:$0xff]
      %v246 = vld [vmem:[%s210 + $0x88] sm:$0xff]
      %v247 = vld [vmem:[%s210 + $0x90] sm:$0xff]
      %v248 = vld [vmem:[%s210 + $0x98] sm:$0xff]
      %v249 = vld [vmem:[%s210 + $0xa0] sm:$0xff]
      %v250 = vld [vmem:[%s210 + $0xa8] sm:$0xff]
      %v251 = vld [vmem:[%s210 + $0xb0] sm:$0xff]
      %v252 = vld [vmem:[%s210 + $0xb8] sm:$0xff]
      %v253 = vld [vmem:[%s210 + $0xc0] sm:$0xff]
      %v254 = vld [vmem:[%s210 + $0xc8] sm:$0xff]
      %v255 = vld [vmem:[%s210 + $0xd0] sm:$0xff]
      %v256 = vld [vmem:[%s210 + $0xd8] sm:$0xff]
      %v257 = vld [vmem:[%s210 + $0xe0] sm:$0xff]
      %v258 = vld [vmem:[%s210 + $0xe8] sm:$0xff]
      %v259 = vld [vmem:[%s210 + $0xf0] sm:$0xff]
      %v260 = vld [vmem:[%s210 + $0xf8] sm:$0xff]
      %v261 = vld [vmem:[%s215] sm:$0xf]
      %v262 = vld [vmem:[%s215 + $0x4] sm:$0xf]
      %v263 = vld [vmem:[%s215 + $0x8] sm:$0xf]
      %v264 = vld [vmem:[%s215 + $0xc] sm:$0xf]
      %v265 = vld [vmem:[%s215 + $0x10] sm:$0xf]
      %v266 = vld [vmem:[%s215 + $0x14] sm:$0xf]
      %v267 = vld [vmem:[%s215 + $0x18] sm:$0xf]
      %v268 = vld [vmem:[%s215 + $0x1c] sm:$0xf]
      %v269 = vld [vmem:[%s215 + $0x20] sm:$0xf]
      %v270 = vld [vmem:[%s215 + $0x24] sm:$0xf]
      %v271 = vld [vmem:[%s215 + $0x28] sm:$0xf]
      %v272 = vld [vmem:[%s215 + $0x2c] sm:$0xf]
      %v273 = vld [vmem:[%s215 + $0x30] sm:$0xf]
      %v274 = vld [vmem:[%s215 + $0x34] sm:$0xf]
      %v275 = vld [vmem:[%s215 + $0x38] sm:$0xf]
      %v276 = vld [vmem:[%s215 + $0x3c] sm:$0xf]
      %v277 = vld [vmem:[%s215 + $0x40] sm:$0xf]
      %v278 = vld [vmem:[%s215 + $0x44] sm:$0xf]
      %v279 = vld [vmem:[%s218] sm:$0x1]
      %v281 = vlaneseq
      %v282 = vshrl.u32 %v281, 7
      %v283 = vsub.s32 0, %v282
      %v284 = vrot.slane %v279, %v283
      %v318 = vunpack.c.l.b16 %v229
      %v319 = vunpack.c.h.b16 %v229
      %v320 = vunpack.c.l.b16 %v230
      %v321 = vunpack.c.h.b16 %v230
      %v322 = vunpack.c.l.b16 %v231
      %v323 = vunpack.c.h.b16 %v231
      %v324 = vunpack.c.l.b16 %v232
      %v325 = vunpack.c.h.b16 %v232
      %v326 = vunpack.c.l.b16 %v233
      %v327 = vunpack.c.h.b16 %v233
      %v328 = vunpack.c.l.b16 %v234
      %v329 = vunpack.c.h.b16 %v234
      %v330 = vunpack.c.l.b16 %v235
      %v331 = vunpack.c.h.b16 %v235
      %v332 = vunpack.c.l.b16 %v236
      %v333 = vunpack.c.h.b16 %v236
      %v334 = vunpack.c.l.b16 %v237
      %v335 = vunpack.c.h.b16 %v237
      %v336 = vunpack.c.l.b16 %v238
      %v337 = vunpack.c.h.b16 %v238
      %v338 = vunpack.c.l.b16 %v239
      %v339 = vunpack.c.h.b16 %v239
      %v340 = vunpack.c.l.b16 %v240
      %v341 = vunpack.c.h.b16 %v240
      %v342 = vunpack.c.l.b16 %v241
      %v343 = vunpack.c.h.b16 %v241
      %v344 = vunpack.c.l.b16 %v242
      %v345 = vunpack.c.h.b16 %v242
      %v346 = vunpack.c.l.b16 %v243
      %v347 = vunpack.c.h.b16 %v243
      %v348 = vunpack.c.l.b16 %v244
      %v349 = vunpack.c.h.b16 %v244
      %v350 = vunpack.c.l.b16 %v245
      %v351 = vunpack.c.h.b16 %v245
      %v352 = vunpack.c.l.b16 %v246
      %v353 = vunpack.c.h.b16 %v246
      %v354 = vunpack.c.l.b16 %v247
      %v355 = vunpack.c.h.b16 %v247
      %v356 = vunpack.c.l.b16 %v248
      %v357 = vunpack.c.h.b16 %v248
      %v358 = vunpack.c.l.b16 %v249
      %v359 = vunpack.c.h.b16 %v249
      %v360 = vunpack.c.l.b16 %v250
      %v361 = vunpack.c.h.b16 %v250
      %v362 = vunpack.c.l.b16 %v251
      %v363 = vunpack.c.h.b16 %v251
      %v364 = vunpack.c.l.b16 %v252
      %v365 = vunpack.c.h.b16 %v252
      %v366 = vunpack.c.l.b16 %v253
      %v367 = vunpack.c.h.b16 %v253
      %v368 = vunpack.c.l.b16 %v254
      %v369 = vunpack.c.h.b16 %v254
      %v370 = vunpack.c.l.b16 %v255
      %v371 = vunpack.c.h.b16 %v255
      %v372 = vunpack.c.l.b16 %v256
      %v373 = vunpack.c.h.b16 %v256
      %v374 = vunpack.c.l.b16 %v257
      %v375 = vunpack.c.h.b16 %v257
      %v376 = vunpack.c.l.b16 %v258
      %v377 = vunpack.c.h.b16 %v258
      %v378 = vunpack.c.l.b16 %v259
      %v379 = vunpack.c.h.b16 %v259
      %v380 = vunpack.c.l.b16 %v260
      %v381 = vunpack.c.h.b16 %v260
      %v382 = vpack.c.b16 %v320, %v318
      %v383 = vpack.c.b16 %v321, %v319
      %v384 = vpack.c.b16 %v324, %v322
      %v385 = vpack.c.b16 %v325, %v323
      %v386 = vpack.c.b16 %v328, %v326
      %v387 = vpack.c.b16 %v329, %v327
      %v388 = vpack.c.b16 %v332, %v330
      %v389 = vpack.c.b16 %v333, %v331
      %v390 = vpack.c.b16 %v336, %v334
      %v391 = vpack.c.b16 %v337, %v335
      %v392 = vpack.c.b16 %v340, %v338
      %v393 = vpack.c.b16 %v341, %v339
      %v394 = vpack.c.b16 %v344, %v342
      %v395 = vpack.c.b16 %v345, %v343
      %v396 = vpack.c.b16 %v348, %v346
      %v397 = vpack.c.b16 %v349, %v347
      %v398 = vpack.c.b16 %v352, %v350
      %v399 = vpack.c.b16 %v353, %v351
      %v400 = vpack.c.b16 %v356, %v354
      %v401 = vpack.c.b16 %v357, %v355
      %v402 = vpack.c.b16 %v360, %v358
      %v403 = vpack.c.b16 %v361, %v359
      %v404 = vpack.c.b16 %v364, %v362
      %v405 = vpack.c.b16 %v365, %v363
      %v406 = vpack.c.b16 %v368, %v366
      %v407 = vpack.c.b16 %v369, %v367
      %v408 = vpack.c.b16 %v372, %v370
      %v409 = vpack.c.b16 %v373, %v371
      %v410 = vpack.c.b16 %v376, %v374
      %v411 = vpack.c.b16 %v377, %v375
      %v412 = vpack.c.b16 %v380, %v378
      %v413 = vpack.c.b16 %v381, %v379
      %v448 = vunpack.c.l.b16 %v261
      %v449 = vunpack.c.l.b16 %v262
      %v450 = vunpack.c.l.b16 %v263
      %v451 = vunpack.c.l.b16 %v264
      %v452 = vunpack.c.l.b16 %v265
      %v453 = vunpack.c.l.b16 %v266
      %v454 = vunpack.c.l.b16 %v267
      %v455 = vunpack.c.l.b16 %v268
      %v456 = vunpack.c.l.b16 %v269
      %v457 = vunpack.c.l.b16 %v270
      %v458 = vunpack.c.l.b16 %v271
      %v459 = vunpack.c.l.b16 %v272
      %v460 = vunpack.c.l.b16 %v273
      %v461 = vunpack.c.l.b16 %v274
      %v462 = vunpack.c.l.b16 %v275
      %v463 = vunpack.c.l.b16 %v276
      %v464 = vunpack.c.l.b16 %v277
      %v465 = vunpack.c.l.b16 %v278
      %v466 = vpack.c.b16 %v449, %v448
      %v467 = vpack.c.b16 %v451, %v450
      %v468 = vpack.c.b16 %v453, %v452
      %v469 = vpack.c.b16 %v455, %v454
      %v470 = vpack.c.b16 %v457, %v456
      %v471 = vpack.c.b16 %v459, %v458
      %v472 = vpack.c.b16 %v461, %v460
      %v473 = vpack.c.b16 %v463, %v462
      %v474 = vpack.c.b16 %v465, %v464
      %vm484 = vcmask 130048
      %v486 = vsel %vm484, %v383, 0
      %v489 = vsel %vm484, %v385, 0
      %v492 = vsel %vm484, %v387, 0
      %v495 = vsel %vm484, %v389, 0
      %v498 = vsel %vm484, %v391, 0
      %v501 = vsel %vm484, %v393, 0
      %v504 = vsel %vm484, %v395, 0
      %v507 = vsel %vm484, %v397, 0
      %v510 = vsel %vm484, %v399, 0
      %v513 = vsel %vm484, %v401, 0
      %v516 = vsel %vm484, %v403, 0
      %v519 = vsel %vm484, %v405, 0
      %v522 = vsel %vm484, %v407, 0
      %v525 = vsel %vm484, %v409, 0
      %v528 = vsel %vm484, %v411, 0
      %v531 = vsel %vm484, %v413, 0
      %533 = vmatprep.subr.bf16.mxu0 0
      %534 = vmatpush1.bf16.msra.mxu0 %v466
      %535 = vmatprep.subr.bf16.mxu0 0
      %536 = vmatpush1.bf16.msra.mxu0 %v467
      %537 = vmatprep.subr.bf16.mxu0 0
      %538 = vmatpush1.bf16.msra.mxu0 %v468
      %539 = vmatprep.subr.bf16.mxu0 0
      %540 = vmatpush1.bf16.msra.mxu0 %v469
      %541 = vmatprep.subr.bf16.mxu0 0
      %542 = vmatpush1.bf16.msra.mxu0 %v470
      %543 = vmatprep.subr.bf16.mxu0 0
      %544 = vmatpush1.bf16.msra.mxu0 %v471
      %545 = vmatprep.subr.bf16.mxu0 0
      %546 = vmatpush1.bf16.msra.mxu0 %v472
      %547 = vmatprep.subr.bf16.mxu0 0
      %548 = vmatpush1.bf16.msra.mxu0 %v473
      %549 = vmatprep.subr.bf16.mxu0 0
      %550 = vmatpush1.bf16.msra.mxu0 %v474
      %551 = vmatprep.subr.bf16.mxu0 0
      %552 = vmatpush1.bf16.msra.mxu0 0
      %553 = vmatprep.subr.bf16.mxu0 0
      %554 = vmatpush1.bf16.msra.mxu0 0
      %555 = vmatprep.subr.bf16.mxu0 0
      %556 = vmatpush1.bf16.msra.mxu0 0
      %557 = vmatprep.subr.bf16.mxu0 0
      %558 = vmatpush1.bf16.msra.mxu0 0
      %559 = vmatprep.subr.bf16.mxu0 0
      %560 = vmatpush1.bf16.msra.mxu0 0
      %561 = vmatprep.subr.bf16.mxu0 0
      %562 = vmatpush1.bf16.msra.mxu0 0
      %563 = vmatprep.subr.bf16.mxu0 0
      %564 = vmatpush1.bf16.msra.mxu0 0
      %565 = vmatprep.mubr.bf16.mxu0 %v486
      %566 = vmatmul.mubr.bf16.gmra.mrb[0].mxu0 %v382
      %v567 = vpop.f32.mrb[0].mxu0
      %v568 = vadd.f32 %v284, %v567
      %v569 = vpop.f32.mrb[0].mxu0
      %v570 = vpop.f32.mrb[0].mxu0
      %v571 = vadd.f32 %v284, %v570
      %v572 = vpop.f32.mrb[0].mxu0
      %573 = vmatprep.mubr.bf16.mxu0 %v489
      %574 = vmatmul.mubr.bf16.gmra.mrb[0].mxu0 %v384
      %v575 = vpop.f32.mrb[0].mxu0
      %v576 = vadd.f32 %v284, %v575
      %v577 = vpop.f32.mrb[0].mxu0
      %v578 = vpop.f32.mrb[0].mxu0
      %v579 = vadd.f32 %v284, %v578
      %v580 = vpop.f32.mrb[0].mxu0
      %581 = vmatprep.mubr.bf16.mxu0 %v492
      %582 = vmatmul.mubr.bf16.gmra.mrb[0].mxu0 %v386
      %v583 = vpop.f32.mrb[0].mxu0
      %v584 = vadd.f32 %v284, %v583
      %v585 = vpop.f32.mrb[0].mxu0
      %v586 = vpop.f32.mrb[0].mxu0
      %v587 = vadd.f32 %v284, %v586
      %v588 = vpop.f32.mrb[0].mxu0
      %589 = vmatprep.mubr.bf16.mxu0 %v495
      %590 = vmatmul.mubr.bf16.gmra.mrb[0].mxu0 %v388
      %v591 = vpop.f32.mrb[0].mxu0
      %v592 = vadd.f32 %v284, %v591
      %v593 = vpop.f32.mrb[0].mxu0
      %v594 = vpop.f32.mrb[0].mxu0
      %v595 = vadd.f32 %v284, %v594
      %v596 = vpop.f32.mrb[0].mxu0
      %597 = vmatprep.mubr.bf16.mxu0 %v498
      %598 = vmatmul.mubr.bf16.gmra.mrb[0].mxu0 %v390
      %v599 = vpop.f32.mrb[0].mxu0
      %v600 = vadd.f32 %v284, %v599
      %v601 = vpop.f32.mrb[0].mxu0
      %v602 = vpop.f32.mrb[0].mxu0
      %v603 = vadd.f32 %v284, %v602
      %v604 = vpop.f32.mrb[0].mxu0
      %605 = vmatprep.mubr.bf16.mxu0 %v501
      %606 = vmatmul.mubr.bf16.gmra.mrb[0].mxu0 %v392
      %v607 = vpop.f32.mrb[0].mxu0
      %v608 = vadd.f32 %v284, %v607
      %v609 = vpop.f32.mrb[0].mxu0
      %v610 = vpop.f32.mrb[0].mxu0
      %v611 = vadd.f32 %v284, %v610
      %v612 = vpop.f32.mrb[0].mxu0
      %613 = vmatprep.mubr.bf16.mxu0 %v504
      %614 = vmatmul.mubr.bf16.gmra.mrb[0].mxu0 %v394
      %v615 = vpop.f32.mrb[0].mxu0
      %v616 = vadd.f32 %v284, %v615
      %v617 = vpop.f32.mrb[0].mxu0
      %v618 = vpop.f32.mrb[0].mxu0
      %v619 = vadd.f32 %v284, %v618
      %v620 = vpop.f32.mrb[0].mxu0
      %621 = vmatprep.mubr.bf16.mxu0 %v507
      %622 = vmatmul.mubr.bf16.gmra.mrb[0].mxu0 %v396
      %v623 = vpop.f32.mrb[0].mxu0
      %v624 = vadd.f32 %v284, %v623
      %v625 = vpop.f32.mrb[0].mxu0
      %v626 = vpop.f32.mrb[0].mxu0
      %v627 = vadd.f32 %v284, %v626
      %v628 = vpop.f32.mrb[0].mxu0
      %629 = vmatprep.mubr.bf16.mxu0 %v510
      %630 = vmatmul.mubr.bf16.gmra.mrb[0].mxu0 %v398
      %v631 = vpop.f32.mrb[0].mxu0
      %v632 = vadd.f32 %v284, %v631
      %v633 = vpop.f32.mrb[0].mxu0
      %v634 = vpop.f32.mrb[0].mxu0
      %v635 = vadd.f32 %v284, %v634
      %v636 = vpop.f32.mrb[0].mxu0
      %637 = vmatprep.mubr.bf16.mxu0 %v513
      %638 = vmatmul.mubr.bf16.gmra.mrb[0].mxu0 %v400
      %v639 = vpop.f32.mrb[0].mxu0
      %v640 = vadd.f32 %v284, %v639
      %v641 = vpop.f32.mrb[0].mxu0
      %v642 = vpop.f32.mrb[0].mxu0
      %v643 = vadd.f32 %v284, %v642
      %v644 = vpop.f32.mrb[0].mxu0
      %645 = vmatprep.mubr.bf16.mxu0 %v516
      %646 = vmatmul.mubr.bf16.gmra.mrb[0].mxu0 %v402
      %v647 = vpop.f32.mrb[0].mxu0
      %v648 = vadd.f32 %v284, %v647
      %v649 = vpop.f32.mrb[0].mxu0
      %v650 = vpop.f32.mrb[0].mxu0
      %v651 = vadd.f32 %v284, %v650
      %v652 = vpop.f32.mrb[0].mxu0
      %653 = vmatprep.mubr.bf16.mxu0 %v519
      %654 = vmatmul.mubr.bf16.gmra.mrb[0].mxu0 %v404
      %v655 = vpop.f32.mrb[0].mxu0
      %v656 = vadd.f32 %v284, %v655
      %v657 = vpop.f32.mrb[0].mxu0
      %v658 = vpop.f32.mrb[0].mxu0
      %v659 = vadd.f32 %v284, %v658
      %v660 = vpop.f32.mrb[0].mxu0
      %661 = vmatprep.mubr.bf16.mxu0 %v522
      %662 = vmatmul.mubr.bf16.gmra.mrb[0].mxu0 %v406
      %v663 = vpop.f32.mrb[0].mxu0
      %v664 = vadd.f32 %v284, %v663
      %v665 = vpop.f32.mrb[0].mxu0
      %v666 = vpop.f32.mrb[0].mxu0
      %v667 = vadd.f32 %v284, %v666
      %v668 = vpop.f32.mrb[0].mxu0
      %669 = vmatprep.mubr.bf16.mxu0 %v525
      %670 = vmatmul.mubr.bf16.gmra.mrb[0].mxu0 %v408
      %v671 = vpop.f32.mrb[0].mxu0
      %v672 = vadd.f32 %v284, %v671
      %v673 = vpop.f32.mrb[0].mxu0
      %v674 = vpop.f32.mrb[0].mxu0
      %v675 = vadd.f32 %v284, %v674
      %v676 = vpop.f32.mrb[0].mxu0
      %677 = vmatprep.mubr.bf16.mxu0 %v528
      %678 = vmatmul.mubr.bf16.gmra.mrb[0].mxu0 %v410
      %v679 = vpop.f32.mrb[0].mxu0
      %v680 = vadd.f32 %v284, %v679
      %v681 = vpop.f32.mrb[0].mxu0
      %v682 = vpop.f32.mrb[0].mxu0
      %v683 = vadd.f32 %v284, %v682
      %v684 = vpop.f32.mrb[0].mxu0
      %685 = vmatprep.mubr.bf16.mxu0 %v531
      %686 = vmatmul.mubr.bf16.gmra.mrb[0].mxu0 %v412
      %v687 = vpop.f32.mrb[0].mxu0
      %v688 = vadd.f32 %v284, %v687
      %v689 = vpop.f32.mrb[0].mxu0
      %v690 = vpop.f32.mrb[0].mxu0
      %v691 = vadd.f32 %v284, %v690
      %v692 = vpop.f32.mrb[0].mxu0
      %693 = vdwg.mxu0
      %694 = vst [vmem:[%s226] sm:$0xff] %v568
      %695 = vst [vmem:[%s226 + $0x8] sm:$0xff] %v571
      %696 = vst [vmem:[%s226 + $0x10] sm:$0xff] %v576
      %697 = vst [vmem:[%s226 + $0x18] sm:$0xff] %v579
      %698 = vst [vmem:[%s226 + $0x20] sm:$0xff] %v584
      %699 = vst [vmem:[%s226 + $0x28] sm:$0xff] %v587
      %700 = vst [vmem:[%s226 + $0x30] sm:$0xff] %v592
      %701 = vst [vmem:[%s226 + $0x38] sm:$0xff] %v595
      %702 = vst [vmem:[%s226 + $0x40] sm:$0xff] %v600
      %703 = vst [vmem:[%s226 + $0x48] sm:$0xff] %v603
      %704 = vst [vmem:[%s226 + $0x50] sm:$0xff] %v608
      %705 = vst [vmem:[%s226 + $0x58] sm:$0xff] %v611
      %706 = vst [vmem:[%s226 + $0x60] sm:$0xff] %v616
      %707 = vst [vmem:[%s226 + $0x68] sm:$0xff] %v619
      %708 = vst [vmem:[%s226 + $0x70] sm:$0xff] %v624
      %709 = vst [vmem:[%s226 + $0x78] sm:$0xff] %v627
      %710 = vst [vmem:[%s226 + $0x80] sm:$0xff] %v632
      %711 = vst [vmem:[%s226 + $0x88] sm:$0xff] %v635
      %712 = vst [vmem:[%s226 + $0x90] sm:$0xff] %v640
      %713 = vst [vmem:[%s226 + $0x98] sm:$0xff] %v643
      %714 = vst [vmem:[%s226 + $0xa0] sm:$0xff] %v648
      %715 = vst [vmem:[%s226 + $0xa8] sm:$0xff] %v651
      %716 = vst [vmem:[%s226 + $0xb0] sm:$0xff] %v656
      %717 = vst [vmem:[%s226 + $0xb8] sm:$0xff] %v659
      %718 = vst [vmem:[%s226 + $0xc0] sm:$0xff] %v664
      %719 = vst [vmem:[%s226 + $0xc8] sm:$0xff] %v667
      %720 = vst [vmem:[%s226 + $0xd0] sm:$0xff] %v672
      %721 = vst [vmem:[%s226 + $0xd8] sm:$0xff] %v675
      %722 = vst [vmem:[%s226 + $0xe0] sm:$0xff] %v680
      %723 = vst [vmem:[%s226 + $0xe8] sm:$0xff] %v683
      %724 = vst [vmem:[%s226 + $0xf0] sm:$0xff] %v688
      %725 = vst [vmem:[%s226 + $0xf8] sm:$0xff] %v691
      %s726 = smul.u32 32, %s18
      %p727 = scmp.lt.s32.totalorder %s726, 63
      %s728 = scalar_select %p727, %s726, 63
      %p729 = scmp.lt.s32.totalorder %s19, 0
      %s730 = scalar_select %p729, %s19, 0
      %s731 = sadd.s32 %s730, %s728
      %s732 = smul.addr %s731, 8
      %s733 = scalar_lea.vmem %s3, %s732
      // Predicated region
      $region33: #{resize_conv2d.1} parent=31 // pred_check
        %p734 = pneg %p124
      $region34: #{resize_conv2d.1} parent=31 // pred_check_branch
        %736 = sbr.rel (%p734) target = $region36
      $region35: #{resize_conv2d.1} parent=31 // pred_region
        %s737 = smul.u32 32, %s18
      $region36: #{resize_conv2d.1} parent=31 // pred_fallthru
        _
    $region32: #{resize_conv2d.1} parent=5 // pred_fallthru
      _
    %p738 = scmp.le.s32.totalorder 2, %s9
    // Predicated region
    $region37: #{resize_conv2d.1} parent=5 // pred_check
      %p739 = pneg %p738
    $region38: #{resize_conv2d.1} parent=5 // pred_check_branch
      %741 = sbr.rel (%p739) target = $region40
    $region39: #{resize_conv2d.1} parent=5 // pred_region
      %s742 = ssub.s32 %s9, 2
      // Predicated region
      $region41: #{resize_conv2d.1} parent=39 // pred_check
        %p743 = pneg %p130
      $region42: #{resize_conv2d.1} parent=39 // pred_check_branch
        %745 = sbr.rel (%p743) target = $region44
      $region43: #{resize_conv2d.1} parent=39 // pred_region
        %s746 = smul.u32 32, %s20
        %p747 = scmp.lt.s32.totalorder %s746, 63
        %s748 = scalar_select %p747, %s746, 63
        %p749 = scmp.lt.s32.totalorder %s21, 0
        %s750 = scalar_select %p749, %s21, 0
        %s751 = sadd.s32 %s750, %s748
        %s752 = smul.addr %s751, 8
        %s753 = scalar_lea.vmem %s3, %s752
      $region44: #{resize_conv2d.1} parent=39 // pred_fallthru
        _
    $region40: #{resize_conv2d.1} parent=5 // pred_fallthru
      _
  $region6: #{resize_conv2d.1} parent=0 // loop_footer
    %s13 = sadd.s32 1, %s9
  $region7: #{resize_conv2d.1} parent=0 // loop_footer_branch
    %8 = sbr.rel target = $region3
  $region8: #{resize_conv2d.1} parent=0 // loop_exit
    _

</llo_original>
